<compile_context>
chip_gen: v6e
topology: v6e:2x2x1
jax: 0.10.0
libtpu: 0.0.40
codegen_flags: <defaults>
</compile_context>

<pallas_src>
import functools

import jax
import jax.numpy as jnp
from jax import lax
from jax.experimental import pallas as pl
from jax.experimental.pallas import tpu as pltpu


def _round_up(n, m):
    return ((n + m - 1) // m) * m


def _vegas_forward_kernel(y_ref, grid_lo_ref, inc_ref, grid_hi_ref,
                          x_ref, logjac_ref, *, ninc, chunk=128):
    """Piecewise-linear VEGAS map forward on one batch tile.

    x[b, d]   = grid[d, iy] + inc[d, iy] * dy      (iy < ninc)
              = grid[d, ninc]                      (iy >= ninc)
    logjac[b] = sum_d log(inc[d, clamp(iy)] * ninc)

    The gather is a chunked one-hot accumulation: per 128-lane chunk of the
    increment axis, ONE compare feeds the mask-accumulation of both tables;
    table chunks stay (dim, 128) and broadcast per-vreg, keeping live VMEM to
    tens of KiB per chunk instead of materializing (TB, dim, ninc) temps.
    """
    ninc_f = jnp.float32(ninc)
    npad = grid_lo_ref.shape[1]                    # ninc padded to %128
    n_chunks = npad // chunk

    y = y_ref[...]                                 # (TB, D) f32
    tb, d = y.shape
    y_ninc = y * ninc_f
    iy = jnp.floor(y_ninc).astype(jnp.int32)       # (TB, D)
    dy = y_ninc - iy.astype(jnp.float32)           # (TB, D)

    in_bounds = iy < ninc                          # torch's `mask`
    # Clamp reproduces the torch iy >= ninc branch (uses inc[d, ninc-1]) and
    # guards negative (out-of-domain) inputs (see correctness note above).
    iy_c = jnp.clip(iy, 0, ninc - 1)               # (TB, D)

    iy_b = iy_c[:, :, None]                        # (TB, D, 1)
    lane = lax.broadcasted_iota(jnp.int32, (1, 1, chunk), 2)

    g_acc = jnp.zeros((tb, d), jnp.float32)
    i_acc = jnp.zeros((tb, d), jnp.float32)
    for c in range(n_chunks):                      # unrolled (npad // 128 steps)
        oh = iy_b == (lane + c * chunk)            # (TB, D, 128) — shared compare
        g_c = grid_lo_ref[:, c * chunk:(c + 1) * chunk]   # (D, 128)
        i_c = inc_ref[:, c * chunk:(c + 1) * chunk]       # (D, 128)
        g_acc = g_acc + jnp.sum(jnp.where(oh, g_c, 0.0), axis=2)
        i_acc = i_acc + jnp.sum(jnp.where(oh, i_c, 0.0), axis=2)

    # in-bounds: grid + inc*dy ; out-of-bounds: grid[d, ninc] exactly.
    x = jnp.where(in_bounds, g_acc + i_acc * dy, grid_hi_ref[...])    # (TB, D)
    # log(prod_d) as sum_d(log): EUP slot, no serial jac dependency chain.
    logjac = jnp.sum(jnp.log(i_acc * ninc_f), axis=1, keepdims=True)  # (TB, 1)

    x_ref[...] = x
    logjac_ref[...] = logjac


def vegas_coupling_forward(y, grid, inc):
    """Pallas wrapper; mirrors PieceWiseVegasCoupling.forward(y)."""
    batch, dim = y.shape
    ninc = inc.shape[1]
    assert grid.shape == (dim, ninc + 1)

    y = y.astype(jnp.float32)
    grid_lo = grid[:, :ninc].astype(jnp.float32)          # (dim, ninc)
    grid_hi = grid[:, ninc][None, :].astype(jnp.float32)  # (1, dim) hi edge
    inc_f = inc.astype(jnp.float32)

    # Pad the gather axis to a multiple of 128 lanes (padded lanes never match
    # a clamped index, so results are unchanged).
    npad = _round_up(ninc, 128)
    if npad != ninc:
        pad = ((0, 0), (0, npad - ninc))
        grid_lo = jnp.pad(grid_lo, pad)
        inc_f = jnp.pad(inc_f, pad)

    # Batch tile: big enough to amortize ~0.35us/step pipeline overhead, small
    # enough that per-chunk gather temporaries stay inside every generation's
    # default scoped VMEM (incl. v7x), and capped at half the batch so the
    # grid has >= 2 steps and both v7x TensorCores get work.
    half = (batch + 1) // 2
    TB = min(256, max(8, _round_up(half, 8)))
    padded = _round_up(batch, TB)
    if padded != batch:
        y_p = jnp.pad(y, ((0, padded - batch), (0, 0)), constant_values=0.5)
    else:
        y_p = y
    steps = padded // TB

    cost = pl.CostEstimate(
        flops=5 * padded * dim * npad,            # compare+2 selects+2 accums
        transcendentals=padded * dim,             # the logs
        bytes_accessed=(2 * padded * dim + padded + dim * (2 * npad + 1)) * 4,
    )

    kernel = functools.partial(_vegas_forward_kernel, ninc=ninc)
    x, logjac = pl.pallas_call(
        kernel,
        grid=(steps,),
        in_specs=[
            pl.BlockSpec((TB, dim), lambda i: (i, 0)),     # y (batch-tiled)
            pl.BlockSpec((dim, npad), lambda i: (0, 0)),   # grid[:, :ninc]
            pl.BlockSpec((dim, npad), lambda i: (0, 0)),   # inc
            pl.BlockSpec((1, dim), lambda i: (0, 0)),      # grid[:, ninc]
        ],
        out_specs=(
            pl.BlockSpec((TB, dim), lambda i: (i, 0)),
            pl.BlockSpec((TB, 1), lambda i: (i, 0)),
        ),
        out_shape=(
            jax.ShapeDtypeStruct((padded, dim), jnp.float32),
            jax.ShapeDtypeStruct((padded, 1), jnp.float32),
        ),
        compiler_params=pltpu.CompilerParams(
            dimension_semantics=("parallel",),
        ),
        cost_estimate=cost,
    )(y_p, grid_lo, inc_f, grid_hi)
    return x[:batch], logjac[:batch, 0]


def vegas_coupling_forward_ref(y, grid, inc):
    """Pure-JAX reference that mirrors the torch forward loop exactly."""
    ninc = inc.shape[1]
    y_ninc = y * ninc
    iy = jnp.floor(y_ninc).astype(jnp.int32)
    dy = y_ninc - iy.astype(jnp.float32)
    batch, dim = y.shape
    cols = []
    jac = jnp.ones((batch,), jnp.float32)
    for d in range(dim):
        mask = iy[:, d] < ninc
        idx = jnp.where(mask, iy[:, d], 0)
        xd = jnp.where(mask,
                       grid[d, idx] + inc[d, idx] * dy[:, d],
                       grid[d, ninc])
        cols.append(xd[:, None])
        jac = jac * jnp.where(mask, inc[d, idx] * ninc, inc[d, ninc - 1] * ninc)
    return jnp.concatenate(cols, axis=1), jnp.log(jac)


def make_synthetic_vegas_tables(key, dim, ninc, lo=0.0, hi=1.0):
    """Deterministic non-uniform monotone grid over [lo, hi]^dim."""
    raw = jax.random.uniform(key, (dim, ninc), minval=0.5, maxval=1.5,
                             dtype=jnp.float32)
    inc = raw / jnp.sum(raw, axis=1, keepdims=True) * (hi - lo)
    grid = jnp.concatenate(
        [jnp.full((dim, 1), lo, jnp.float32), lo + jnp.cumsum(inc, axis=1)],
        axis=1)
    inc = grid[:, 1:] - grid[:, :-1]   # exact diffs of the stored grid
    return grid, inc


if __name__ == "__main__":
    DIM = 8          # num_input_channels
    NINC = 1024      # num_increments (module forces ninc >= 1000)

    key = jax.random.PRNGKey(0)
    k_tab, k_y, k_y2 = jax.random.split(key, 3)
    grid, inc = make_synthetic_vegas_tables(k_tab, DIM, NINC)

    # Small case (single tile); includes y > 1 so the iy >= ninc branch runs.
    BATCH = 8
    y = jax.random.uniform(k_y, (BATCH, DIM), minval=0.0, maxval=1.05,
                           dtype=jnp.float32)
    x, log_jac = vegas_coupling_forward(y, grid, inc)
    jax.block_until_ready((x, log_jac))
    x_ref, lj_ref = vegas_coupling_forward_ref(y, grid, inc)
    assert x.shape == (BATCH, DIM) and log_jac.shape == (BATCH,)
    assert jnp.allclose(x, x_ref, rtol=1e-5, atol=1e-6), "x mismatch"
    assert jnp.allclose(log_jac, lj_ref, rtol=1e-5, atol=1e-5), "logjac mismatch"

    # Batch-tiled / padded path (>= 2 pipelined grid steps).
    BATCH2 = 300
    y2 = jax.random.uniform(k_y2, (BATCH2, DIM), minval=0.0, maxval=1.05,
                            dtype=jnp.float32)
    x2, lj2 = vegas_coupling_forward(y2, grid, inc)
    jax.block_until_ready((x2, lj2))
    x2_ref, lj2_ref = vegas_coupling_forward_ref(y2, grid, inc)
    assert x2.shape == (BATCH2, DIM) and lj2.shape == (BATCH2,)
    assert jnp.allclose(x2, x2_ref, rtol=1e-5, atol=1e-6), "x mismatch (tiled)"
    assert jnp.allclose(lj2, lj2_ref, rtol=1e-5, atol=1e-5), \
        "logjac mismatch (tiled)"

    print("KERNEL_OK")
</pallas_src>

<mosaic_0001>
module attributes {stable_mosaic.version = 11 : i64} {
  func.func @_vegas_forward_kernel(%arg0: i32, %arg1: memref<8x8xf32, #tpu.memory_space<vmem>>, %arg2: memref<8x1024xf32, #tpu.memory_space<vmem>>, %arg3: memref<8x1024xf32, #tpu.memory_space<vmem>>, %arg4: memref<1x8xf32, #tpu.memory_space<vmem>>, %arg5: memref<8x8xf32, #tpu.memory_space<vmem>>, %arg6: memref<8x1xf32, #tpu.memory_space<vmem>>) attributes {dimension_semantics = [#tpu.dimension_semantics<parallel>], iteration_bounds = array<i64: 1>, scalar_prefetch = 0 : i64, scratch_operands = 0 : i64, tpu.core_type = #tpu.core_type<tc>, window_params = [{transform_indices = @transform_0, window_bounds = array<i64: 8, 8>}, {pipeline_mode = #tpu.pipeline_mode<synchronous>, transform_indices = @transform_1, window_bounds = array<i64: 8, 1024>}, {pipeline_mode = #tpu.pipeline_mode<synchronous>, transform_indices = @transform_2, window_bounds = array<i64: 8, 1024>}, {pipeline_mode = #tpu.pipeline_mode<synchronous>, transform_indices = @transform_3, window_bounds = array<i64: 1, 8>}, {transform_indices = @transform_4, window_bounds = array<i64: 8, 8>}, {transform_indices = @transform_5, window_bounds = array<i64: 8, 1>}]} {
    %c0 = arith.constant 0 : index
    %c0_0 = arith.constant 0 : index
    %0 = vector.load %arg1[%c0, %c0_0] : memref<8x8xf32, #tpu.memory_space<vmem>>, vector<8x8xf32>
    %cst = arith.constant 1.024000e+03 : f32
    %1 = vector.broadcast %cst : f32 to vector<8x8xf32>
    %2 = arith.mulf %0, %1 : vector<8x8xf32>
    %3 = math.floor %2 : vector<8x8xf32>
    %4 = arith.fptosi %3 : vector<8x8xf32> to vector<8x8xi32>
    %5 = arith.sitofp %4 : vector<8x8xi32> to vector<8x8xf32>
    %6 = arith.subf %2, %5 : vector<8x8xf32>
    %c1024_i32 = arith.constant 1024 : i32
    %7 = vector.broadcast %c1024_i32 : i32 to vector<8x8xi32>
    %8 = arith.cmpi slt, %4, %7 : vector<8x8xi32>
    %c0_i32 = arith.constant 0 : i32
    %c1023_i32 = arith.constant 1023 : i32
    %9 = vector.broadcast %c0_i32 : i32 to vector<8x8xi32>
    %10 = arith.maxsi %9, %4 : vector<8x8xi32>
    %11 = vector.broadcast %c1023_i32 : i32 to vector<8x8xi32>
    %12 = arith.minsi %11, %10 : vector<8x8xi32>
    %13 = vector.shape_cast %12 : vector<8x8xi32> to vector<8x8x1xi32>
    %14 = tpu.iota {dimensions = array<i32: 2>} : vector<1x1x128xi32>
    %cst_1 = arith.constant 0.000000e+00 : f32
    %15 = vector.broadcast %cst_1 : f32 to vector<8x8xf32>
    %cst_2 = arith.constant 0.000000e+00 : f32
    %16 = vector.broadcast %cst_2 : f32 to vector<8x8xf32>
    %c0_i32_3 = arith.constant 0 : i32
    %17 = vector.broadcast %c0_i32_3 : i32 to vector<1x1x128xi32>
    %18 = arith.addi %14, %17 : vector<1x1x128xi32>
    %19 = vector.broadcast %13 : vector<8x8x1xi32> to vector<8x8x128xi32>
    %20 = vector.broadcast %18 : vector<1x1x128xi32> to vector<8x8x128xi32>
    %21 = arith.cmpi eq, %19, %20 : vector<8x8x128xi32>
    %c0_4 = arith.constant 0 : index
    %c0_5 = arith.constant 0 : index
    %22 = vector.load %arg2[%c0_4, %c0_5] : memref<8x1024xf32, #tpu.memory_space<vmem>>, vector<8x128xf32>
    %c0_6 = arith.constant 0 : index
    %c0_7 = arith.constant 0 : index
    %23 = vector.load %arg3[%c0_6, %c0_7] : memref<8x1024xf32, #tpu.memory_space<vmem>>, vector<8x128xf32>
    %cst_8 = arith.constant 0.000000e+00 : f32
    %24 = vector.shape_cast %22 : vector<8x128xf32> to vector<1x8x128xf32>
    %25 = vector.broadcast %24 : vector<1x8x128xf32> to vector<8x8x128xf32>
    %26 = vector.broadcast %cst_8 : f32 to vector<8x8x128xf32>
    %27 = arith.select %21, %25, %26 : vector<8x8x128xi1>, vector<8x8x128xf32>
    %cst_9 = arith.constant dense<0.000000e+00> : vector<8x8xf32>
    %28 = vector.multi_reduction <add>, %27, %cst_9 [2] : vector<8x8x128xf32> to vector<8x8xf32>
    %29 = arith.addf %15, %28 : vector<8x8xf32>
    %cst_10 = arith.constant 0.000000e+00 : f32
    %30 = vector.shape_cast %23 : vector<8x128xf32> to vector<1x8x128xf32>
    %31 = vector.broadcast %30 : vector<1x8x128xf32> to vector<8x8x128xf32>
    %32 = vector.broadcast %cst_10 : f32 to vector<8x8x128xf32>
    %33 = arith.select %21, %31, %32 : vector<8x8x128xi1>, vector<8x8x128xf32>
    %cst_11 = arith.constant dense<0.000000e+00> : vector<8x8xf32>
    %34 = vector.multi_reduction <add>, %33, %cst_11 [2] : vector<8x8x128xf32> to vector<8x8xf32>
    %35 = arith.addf %16, %34 : vector<8x8xf32>
    %c128_i32 = arith.constant 128 : i32
    %36 = vector.broadcast %c128_i32 : i32 to vector<1x1x128xi32>
    %37 = arith.addi %14, %36 : vector<1x1x128xi32>
    %38 = vector.broadcast %13 : vector<8x8x1xi32> to vector<8x8x128xi32>
    %39 = vector.broadcast %37 : vector<1x1x128xi32> to vector<8x8x128xi32>
    %40 = arith.cmpi eq, %38, %39 : vector<8x8x128xi32>
    %c0_12 = arith.constant 0 : index
    %c128 = arith.constant 128 : index
    %41 = vector.load %arg2[%c0_12, %c128] : memref<8x1024xf32, #tpu.memory_space<vmem>>, vector<8x128xf32>
    %c0_13 = arith.constant 0 : index
    %c128_14 = arith.constant 128 : index
    %42 = vector.load %arg3[%c0_13, %c128_14] : memref<8x1024xf32, #tpu.memory_space<vmem>>, vector<8x128xf32>
    %cst_15 = arith.constant 0.000000e+00 : f32
    %43 = vector.shape_cast %41 : vector<8x128xf32> to vector<1x8x128xf32>
    %44 = vector.broadcast %43 : vector<1x8x128xf32> to vector<8x8x128xf32>
    %45 = vector.broadcast %cst_15 : f32 to vector<8x8x128xf32>
    %46 = arith.select %40, %44, %45 : vector<8x8x128xi1>, vector<8x8x128xf32>
    %cst_16 = arith.constant dense<0.000000e+00> : vector<8x8xf32>
    %47 = vector.multi_reduction <add>, %46, %cst_16 [2] : vector<8x8x128xf32> to vector<8x8xf32>
    %48 = arith.addf %29, %47 : vector<8x8xf32>
    %cst_17 = arith.constant 0.000000e+00 : f32
    %49 = vector.shape_cast %42 : vector<8x128xf32> to vector<1x8x128xf32>
    %50 = vector.broadcast %49 : vector<1x8x128xf32> to vector<8x8x128xf32>
    %51 = vector.broadcast %cst_17 : f32 to vector<8x8x128xf32>
    %52 = arith.select %40, %50, %51 : vector<8x8x128xi1>, vector<8x8x128xf32>
    %cst_18 = arith.constant dense<0.000000e+00> : vector<8x8xf32>
    %53 = vector.multi_reduction <add>, %52, %cst_18 [2] : vector<8x8x128xf32> to vector<8x8xf32>
    %54 = arith.addf %35, %53 : vector<8x8xf32>
    %c256_i32 = arith.constant 256 : i32
    %55 = vector.broadcast %c256_i32 : i32 to vector<1x1x128xi32>
    %56 = arith.addi %14, %55 : vector<1x1x128xi32>
    %57 = vector.broadcast %13 : vector<8x8x1xi32> to vector<8x8x128xi32>
    %58 = vector.broadcast %56 : vector<1x1x128xi32> to vector<8x8x128xi32>
    %59 = arith.cmpi eq, %57, %58 : vector<8x8x128xi32>
    %c0_19 = arith.constant 0 : index
    %c256 = arith.constant 256 : index
    %60 = vector.load %arg2[%c0_19, %c256] : memref<8x1024xf32, #tpu.memory_space<vmem>>, vector<8x128xf32>
    %c0_20 = arith.constant 0 : index
    %c256_21 = arith.constant 256 : index
    %61 = vector.load %arg3[%c0_20, %c256_21] : memref<8x1024xf32, #tpu.memory_space<vmem>>, vector<8x128xf32>
    %cst_22 = arith.constant 0.000000e+00 : f32
    %62 = vector.shape_cast %60 : vector<8x128xf32> to vector<1x8x128xf32>
    %63 = vector.broadcast %62 : vector<1x8x128xf32> to vector<8x8x128xf32>
    %64 = vector.broadcast %cst_22 : f32 to vector<8x8x128xf32>
    %65 = arith.select %59, %63, %64 : vector<8x8x128xi1>, vector<8x8x128xf32>
    %cst_23 = arith.constant dense<0.000000e+00> : vector<8x8xf32>
    %66 = vector.multi_reduction <add>, %65, %cst_23 [2] : vector<8x8x128xf32> to vector<8x8xf32>
    %67 = arith.addf %48, %66 : vector<8x8xf32>
    %cst_24 = arith.constant 0.000000e+00 : f32
    %68 = vector.shape_cast %61 : vector<8x128xf32> to vector<1x8x128xf32>
    %69 = vector.broadcast %68 : vector<1x8x128xf32> to vector<8x8x128xf32>
    %70 = vector.broadcast %cst_24 : f32 to vector<8x8x128xf32>
    %71 = arith.select %59, %69, %70 : vector<8x8x128xi1>, vector<8x8x128xf32>
    %cst_25 = arith.constant dense<0.000000e+00> : vector<8x8xf32>
    %72 = vector.multi_reduction <add>, %71, %cst_25 [2] : vector<8x8x128xf32> to vector<8x8xf32>
    %73 = arith.addf %54, %72 : vector<8x8xf32>
    %c384_i32 = arith.constant 384 : i32
    %74 = vector.broadcast %c384_i32 : i32 to vector<1x1x128xi32>
    %75 = arith.addi %14, %74 : vector<1x1x128xi32>
    %76 = vector.broadcast %13 : vector<8x8x1xi32> to vector<8x8x128xi32>
    %77 = vector.broadcast %75 : vector<1x1x128xi32> to vector<8x8x128xi32>
    %78 = arith.cmpi eq, %76, %77 : vector<8x8x128xi32>
    %c0_26 = arith.constant 0 : index
    %c384 = arith.constant 384 : index
    %79 = vector.load %arg2[%c0_26, %c384] : memref<8x1024xf32, #tpu.memory_space<vmem>>, vector<8x128xf32>
    %c0_27 = arith.constant 0 : index
    %c384_28 = arith.constant 384 : index
    %80 = vector.load %arg3[%c0_27, %c384_28] : memref<8x1024xf32, #tpu.memory_space<vmem>>, vector<8x128xf32>
    %cst_29 = arith.constant 0.000000e+00 : f32
    %81 = vector.shape_cast %79 : vector<8x128xf32> to vector<1x8x128xf32>
    %82 = vector.broadcast %81 : vector<1x8x128xf32> to vector<8x8x128xf32>
    %83 = vector.broadcast %cst_29 : f32 to vector<8x8x128xf32>
    %84 = arith.select %78, %82, %83 : vector<8x8x128xi1>, vector<8x8x128xf32>
    %cst_30 = arith.constant dense<0.000000e+00> : vector<8x8xf32>
    %85 = vector.multi_reduction <add>, %84, %cst_30 [2] : vector<8x8x128xf32> to vector<8x8xf32>
    %86 = arith.addf %67, %85 : vector<8x8xf32>
    %cst_31 = arith.constant 0.000000e+00 : f32
    %87 = vector.shape_cast %80 : vector<8x128xf32> to vector<1x8x128xf32>
    %88 = vector.broadcast %87 : vector<1x8x128xf32> to vector<8x8x128xf32>
    %89 = vector.broadcast %cst_31 : f32 to vector<8x8x128xf32>
    %90 = arith.select %78, %88, %89 : vector<8x8x128xi1>, vector<8x8x128xf32>
    %cst_32 = arith.constant dense<0.000000e+00> : vector<8x8xf32>
    %91 = vector.multi_reduction <add>, %90, %cst_32 [2] : vector<8x8x128xf32> to vector<8x8xf32>
    %92 = arith.addf %73, %91 : vector<8x8xf32>
    %c512_i32 = arith.constant 512 : i32
    %93 = vector.broadcast %c512_i32 : i32 to vector<1x1x128xi32>
    %94 = arith.addi %14, %93 : vector<1x1x128xi32>
    %95 = vector.broadcast %13 : vector<8x8x1xi32> to vector<8x8x128xi32>
    %96 = vector.broadcast %94 : vector<1x1x128xi32> to vector<8x8x128xi32>
    %97 = arith.cmpi eq, %95, %96 : vector<8x8x128xi32>
    %c0_33 = arith.constant 0 : index
    %c512 = arith.constant 512 : index
    %98 = vector.load %arg2[%c0_33, %c512] : memref<8x1024xf32, #tpu.memory_space<vmem>>, vector<8x128xf32>
    %c0_34 = arith.constant 0 : index
    %c512_35 = arith.constant 512 : index
    %99 = vector.load %arg3[%c0_34, %c512_35] : memref<8x1024xf32, #tpu.memory_space<vmem>>, vector<8x128xf32>
    %cst_36 = arith.constant 0.000000e+00 : f32
    %100 = vector.shape_cast %98 : vector<8x128xf32> to vector<1x8x128xf32>
    %101 = vector.broadcast %100 : vector<1x8x128xf32> to vector<8x8x128xf32>
    %102 = vector.broadcast %cst_36 : f32 to vector<8x8x128xf32>
    %103 = arith.select %97, %101, %102 : vector<8x8x128xi1>, vector<8x8x128xf32>
    %cst_37 = arith.constant dense<0.000000e+00> : vector<8x8xf32>
    %104 = vector.multi_reduction <add>, %103, %cst_37 [2] : vector<8x8x128xf32> to vector<8x8xf32>
    %105 = arith.addf %86, %104 : vector<8x8xf32>
    %cst_38 = arith.constant 0.000000e+00 : f32
    %106 = vector.shape_cast %99 : vector<8x128xf32> to vector<1x8x128xf32>
    %107 = vector.broadcast %106 : vector<1x8x128xf32> to vector<8x8x128xf32>
    %108 = vector.broadcast %cst_38 : f32 to vector<8x8x128xf32>
    %109 = arith.select %97, %107, %108 : vector<8x8x128xi1>, vector<8x8x128xf32>
    %cst_39 = arith.constant dense<0.000000e+00> : vector<8x8xf32>
    %110 = vector.multi_reduction <add>, %109, %cst_39 [2] : vector<8x8x128xf32> to vector<8x8xf32>
    %111 = arith.addf %92, %110 : vector<8x8xf32>
    %c640_i32 = arith.constant 640 : i32
    %112 = vector.broadcast %c640_i32 : i32 to vector<1x1x128xi32>
    %113 = arith.addi %14, %112 : vector<1x1x128xi32>
    %114 = vector.broadcast %13 : vector<8x8x1xi32> to vector<8x8x128xi32>
    %115 = vector.broadcast %113 : vector<1x1x128xi32> to vector<8x8x128xi32>
    %116 = arith.cmpi eq, %114, %115 : vector<8x8x128xi32>
    %c0_40 = arith.constant 0 : index
    %c640 = arith.constant 640 : index
    %117 = vector.load %arg2[%c0_40, %c640] : memref<8x1024xf32, #tpu.memory_space<vmem>>, vector<8x128xf32>
    %c0_41 = arith.constant 0 : index
    %c640_42 = arith.constant 640 : index
    %118 = vector.load %arg3[%c0_41, %c640_42] : memref<8x1024xf32, #tpu.memory_space<vmem>>, vector<8x128xf32>
    %cst_43 = arith.constant 0.000000e+00 : f32
    %119 = vector.shape_cast %117 : vector<8x128xf32> to vector<1x8x128xf32>
    %120 = vector.broadcast %119 : vector<1x8x128xf32> to vector<8x8x128xf32>
    %121 = vector.broadcast %cst_43 : f32 to vector<8x8x128xf32>
    %122 = arith.select %116, %120, %121 : vector<8x8x128xi1>, vector<8x8x128xf32>
    %cst_44 = arith.constant dense<0.000000e+00> : vector<8x8xf32>
    %123 = vector.multi_reduction <add>, %122, %cst_44 [2] : vector<8x8x128xf32> to vector<8x8xf32>
    %124 = arith.addf %105, %123 : vector<8x8xf32>
    %cst_45 = arith.constant 0.000000e+00 : f32
    %125 = vector.shape_cast %118 : vector<8x128xf32> to vector<1x8x128xf32>
    %126 = vector.broadcast %125 : vector<1x8x128xf32> to vector<8x8x128xf32>
    %127 = vector.broadcast %cst_45 : f32 to vector<8x8x128xf32>
    %128 = arith.select %116, %126, %127 : vector<8x8x128xi1>, vector<8x8x128xf32>
    %cst_46 = arith.constant dense<0.000000e+00> : vector<8x8xf32>
    %129 = vector.multi_reduction <add>, %128, %cst_46 [2] : vector<8x8x128xf32> to vector<8x8xf32>
    %130 = arith.addf %111, %129 : vector<8x8xf32>
    %c768_i32 = arith.constant 768 : i32
    %131 = vector.broadcast %c768_i32 : i32 to vector<1x1x128xi32>
    %132 = arith.addi %14, %131 : vector<1x1x128xi32>
    %133 = vector.broadcast %13 : vector<8x8x1xi32> to vector<8x8x128xi32>
    %134 = vector.broadcast %132 : vector<1x1x128xi32> to vector<8x8x128xi32>
    %135 = arith.cmpi eq, %133, %134 : vector<8x8x128xi32>
    %c0_47 = arith.constant 0 : index
    %c768 = arith.constant 768 : index
    %136 = vector.load %arg2[%c0_47, %c768] : memref<8x1024xf32, #tpu.memory_space<vmem>>, vector<8x128xf32>
    %c0_48 = arith.constant 0 : index
    %c768_49 = arith.constant 768 : index
    %137 = vector.load %arg3[%c0_48, %c768_49] : memref<8x1024xf32, #tpu.memory_space<vmem>>, vector<8x128xf32>
    %cst_50 = arith.constant 0.000000e+00 : f32
    %138 = vector.shape_cast %136 : vector<8x128xf32> to vector<1x8x128xf32>
    %139 = vector.broadcast %138 : vector<1x8x128xf32> to vector<8x8x128xf32>
    %140 = vector.broadcast %cst_50 : f32 to vector<8x8x128xf32>
    %141 = arith.select %135, %139, %140 : vector<8x8x128xi1>, vector<8x8x128xf32>
    %cst_51 = arith.constant dense<0.000000e+00> : vector<8x8xf32>
    %142 = vector.multi_reduction <add>, %141, %cst_51 [2] : vector<8x8x128xf32> to vector<8x8xf32>
    %143 = arith.addf %124, %142 : vector<8x8xf32>
    %cst_52 = arith.constant 0.000000e+00 : f32
    %144 = vector.shape_cast %137 : vector<8x128xf32> to vector<1x8x128xf32>
    %145 = vector.broadcast %144 : vector<1x8x128xf32> to vector<8x8x128xf32>
    %146 = vector.broadcast %cst_52 : f32 to vector<8x8x128xf32>
    %147 = arith.select %135, %145, %146 : vector<8x8x128xi1>, vector<8x8x128xf32>
    %cst_53 = arith.constant dense<0.000000e+00> : vector<8x8xf32>
    %148 = vector.multi_reduction <add>, %147, %cst_53 [2] : vector<8x8x128xf32> to vector<8x8xf32>
    %149 = arith.addf %130, %148 : vector<8x8xf32>
    %c896_i32 = arith.constant 896 : i32
    %150 = vector.broadcast %c896_i32 : i32 to vector<1x1x128xi32>
    %151 = arith.addi %14, %150 : vector<1x1x128xi32>
    %152 = vector.broadcast %13 : vector<8x8x1xi32> to vector<8x8x128xi32>
    %153 = vector.broadcast %151 : vector<1x1x128xi32> to vector<8x8x128xi32>
    %154 = arith.cmpi eq, %152, %153 : vector<8x8x128xi32>
    %c0_54 = arith.constant 0 : index
    %c896 = arith.constant 896 : index
    %155 = vector.load %arg2[%c0_54, %c896] : memref<8x1024xf32, #tpu.memory_space<vmem>>, vector<8x128xf32>
    %c0_55 = arith.constant 0 : index
    %c896_56 = arith.constant 896 : index
    %156 = vector.load %arg3[%c0_55, %c896_56] : memref<8x1024xf32, #tpu.memory_space<vmem>>, vector<8x128xf32>
    %cst_57 = arith.constant 0.000000e+00 : f32
    %157 = vector.shape_cast %155 : vector<8x128xf32> to vector<1x8x128xf32>
    %158 = vector.broadcast %157 : vector<1x8x128xf32> to vector<8x8x128xf32>
    %159 = vector.broadcast %cst_57 : f32 to vector<8x8x128xf32>
    %160 = arith.select %154, %158, %159 : vector<8x8x128xi1>, vector<8x8x128xf32>
    %cst_58 = arith.constant dense<0.000000e+00> : vector<8x8xf32>
    %161 = vector.multi_reduction <add>, %160, %cst_58 [2] : vector<8x8x128xf32> to vector<8x8xf32>
    %162 = arith.addf %143, %161 : vector<8x8xf32>
    %cst_59 = arith.constant 0.000000e+00 : f32
    %163 = vector.shape_cast %156 : vector<8x128xf32> to vector<1x8x128xf32>
    %164 = vector.broadcast %163 : vector<1x8x128xf32> to vector<8x8x128xf32>
    %165 = vector.broadcast %cst_59 : f32 to vector<8x8x128xf32>
    %166 = arith.select %154, %164, %165 : vector<8x8x128xi1>, vector<8x8x128xf32>
    %cst_60 = arith.constant dense<0.000000e+00> : vector<8x8xf32>
    %167 = vector.multi_reduction <add>, %166, %cst_60 [2] : vector<8x8x128xf32> to vector<8x8xf32>
    %168 = arith.addf %149, %167 : vector<8x8xf32>
    %169 = arith.mulf %168, %6 : vector<8x8xf32>
    %170 = arith.addf %162, %169 : vector<8x8xf32>
    %c0_61 = arith.constant 0 : index
    %c0_62 = arith.constant 0 : index
    %171 = vector.load %arg4[%c0_61, %c0_62] : memref<1x8xf32, #tpu.memory_space<vmem>>, vector<1x8xf32>
    %172 = vector.shape_cast %171 : vector<1x8xf32> to vector<1x8xf32>
    %173 = vector.broadcast %172 : vector<1x8xf32> to vector<8x8xf32>
    %174 = arith.select %8, %170, %173 : vector<8x8xi1>, vector<8x8xf32>
    %cst_63 = arith.constant 1.024000e+03 : f32
    %175 = vector.broadcast %cst_63 : f32 to vector<8x8xf32>
    %176 = arith.mulf %168, %175 : vector<8x8xf32>
    %177 = math.log %176 : vector<8x8xf32>
    %cst_64 = arith.constant dense<0.000000e+00> : vector<8xf32>
    %178 = vector.multi_reduction <add>, %177, %cst_64 [1] : vector<8x8xf32> to vector<8xf32>
    %179 = vector.shape_cast %178 : vector<8xf32> to vector<8x1xf32>
    %c0_65 = arith.constant 0 : index
    %c0_66 = arith.constant 0 : index
    %180 = vector.load %arg5[%c0_65, %c0_66] : memref<8x8xf32, #tpu.memory_space<vmem>>, vector<8x8xf32>
    tpu.vector_store %arg5[%c0_65, %c0_66], %174 {strides = array<i32>} : memref<8x8xf32, #tpu.memory_space<vmem>>, vector<8x8xf32>,
    %c0_67 = arith.constant 0 : index
    %c0_68 = arith.constant 0 : index
    %181 = vector.load %arg6[%c0_67, %c0_68] : memref<8x1xf32, #tpu.memory_space<vmem>>, vector<8x1xf32>
    tpu.vector_store %arg6[%c0_67, %c0_68], %179 {strides = array<i32>} : memref<8x1xf32, #tpu.memory_space<vmem>>, vector<8x1xf32>,
    return
  }
  func.func @transform_0(%arg0: i32) -> (i32, i32) {
    %c0_i32 = arith.constant 0 : i32
    %c0_i32_0 = arith.constant 0 : i32
    return %arg0, %c0_i32 : i32, i32
  }
  func.func @transform_1(%arg0: i32) -> (i32, i32) {
    %c0_i32 = arith.constant 0 : i32
    %c0_i32_0 = arith.constant 0 : i32
    %c0_i32_1 = arith.constant 0 : i32
    return %c0_i32, %c0_i32_0 : i32, i32
  }
  func.func @transform_2(%arg0: i32) -> (i32, i32) {
    %c0_i32 = arith.constant 0 : i32
    %c0_i32_0 = arith.constant 0 : i32
    %c0_i32_1 = arith.constant 0 : i32
    return %c0_i32, %c0_i32_0 : i32, i32
  }
  func.func @transform_3(%arg0: i32) -> (i32, i32) {
    %c0_i32 = arith.constant 0 : i32
    %c0_i32_0 = arith.constant 0 : i32
    %c0_i32_1 = arith.constant 0 : i32
    return %c0_i32, %c0_i32_0 : i32, i32
  }
  func.func @transform_4(%arg0: i32) -> (i32, i32) {
    %c0_i32 = arith.constant 0 : i32
    %c0_i32_0 = arith.constant 0 : i32
    return %arg0, %c0_i32 : i32, i32
  }
  func.func @transform_5(%arg0: i32) -> (i32, i32) {
    %c0_i32 = arith.constant 0 : i32
    %c0_i32_0 = arith.constant 0 : i32
    return %arg0, %c0_i32 : i32, i32
  }
}

</mosaic_0001>

<llo_original>
// kernel: tpu_custom_call.1
$region0: #{tpu_custom_call.1}
  #allocation0 [shape = 'u32[]', space=smem, size = 0x4, offset = 0x4, fixed_abs, tag = 'smem constant byte address 0x4 - core index']
  #allocation1 [shape = 'u32[144,128]{1,0:T(1,128)}', space=vmem, size = 0x12000, scoped, tag = 'internal scratch']
  %s0 = inlined_call_operand.hbm [shape: f32[8,8], index: 0, kind: input, shape index: {}]
  %s1 = inlined_call_operand.hbm [shape: f32[8,1024], index: 1, kind: input, shape index: {}]
  %s2 = inlined_call_operand.hbm [shape: f32[8,1024], index: 2, kind: input, shape index: {}]
  %s3 = inlined_call_operand.vmem [shape: f32[1,8], index: 3, kind: input, shape index: {}]
  %s4 = inlined_call_operand.hbm [shape: f32[8,8], index: 4, kind: output, shape index: {0}]
  %s5 = inlined_call_operand.vmem [shape: f32[8,1], index: 5, kind: output, shape index: {1}]
  %6 = xla_tuple %s4, %s5
  %s7 = sld [smem:[#allocation0]]
  $region46: #{tpu_custom_call.1} parent=0
    _
  %s9 = ssub.s32 1, %s7
  %s10 = scalar_select 0, %s9, %s7
  $region1: #{tpu_custom_call.1} parent=0
    #allocation2 [shape = 'u8[4096]{0}', space=vmem, size = 0x1000, scoped, tag = 'input window, operand 0, single buffered']
    #allocation3 [shape = 's32[1]{0}', space=sflag, size = 0x4, scoped, tag = 'scoped memory for tpu_custom_call.1']
    #allocation4 [shape = 's32[1]{0}', space=sflag, size = 0x4, scoped, tag = 'scoped memory for tpu_custom_call.1']
    #allocation5 [shape = 'u8[32768]{0}', space=vmem, size = 0x8000, scoped, tag = 'input window, operand 1, single buffered']
    #allocation6 [shape = 's32[1]{0}', space=sflag, size = 0x4, scoped, tag = 'scoped memory for tpu_custom_call.1']
    #allocation7 [shape = 'u8[32768]{0}', space=vmem, size = 0x8000, scoped, tag = 'input window, operand 2, single buffered']
    #allocation8 [shape = 'u8[4096]{0}', space=vmem, size = 0x1000, scoped, tag = 'output window, operand 0, single buffered']
    %11 = vsyncpa [#allocation3], 0
    %12 = vsyncpa [#allocation6], 0
    %13 = vsyncpa [#allocation4], 0
    // Predicated region
    $region2: #{tpu_custom_call.1} parent=1 // pred_check
      _
    $region3: #{tpu_custom_call.1} parent=1 // pred_check_branch
      %15 = sbr.rel (0) target = $region5
    $region4: #{tpu_custom_call.1} parent=1 // pred_region
      %s17 = ssub.s32 128, 128
      %18 = vsyncadd [#allocation3], %s17
      %s20 = sshll.u32 [#allocation2], 4
      %s21 = int_to_ptr.vmem [resolvable:$true] %s20
      %23 = dma.hbm_to_vmem [thread:$0]  %s0, 128, %s21, [#allocation3]
    $region5: #{tpu_custom_call.1} parent=1 // pred_fallthru
      _
    // Predicated region
    $region6: #{tpu_custom_call.1} parent=1 // pred_check
      _
    $region7: #{tpu_custom_call.1} parent=1 // pred_check_branch
      %25 = sbr.rel (0) target = $region9
    $region8: #{tpu_custom_call.1} parent=1 // pred_region
      %s27 = ssub.s32 1024, 1024
      %28 = vsyncadd [#allocation6], %s27
      %s30 = sshll.u32 [#allocation5], 4
      %s31 = int_to_ptr.vmem [resolvable:$true] %s30
      %33 = dma.hbm_to_vmem [thread:$0]  %s1, 1024, %s31, [#allocation6]
    $region9: #{tpu_custom_call.1} parent=1 // pred_fallthru
      _
    // Predicated region
    $region10: #{tpu_custom_call.1} parent=1 // pred_check
      _
    $region11: #{tpu_custom_call.1} parent=1 // pred_check_branch
      %35 = sbr.rel (0) target = $region13
    $region12: #{tpu_custom_call.1} parent=1 // pred_region
      %s37 = ssub.s32 1024, 1024
      %38 = vsyncadd [#allocation6], %s37
      %s40 = sshll.u32 [#allocation7], 4
      %s41 = int_to_ptr.vmem [resolvable:$true] %s40
      %43 = dma.hbm_to_vmem [thread:$0]  %s2, 1024, %s41, [#allocation6]
    $region13: #{tpu_custom_call.1} parent=1 // pred_fallthru
      _
    // Predicated region
    $region14: #{tpu_custom_call.1} parent=1 // pred_check
      _
    $region15: #{tpu_custom_call.1} parent=1 // pred_check_branch
      %45 = sbr.rel (0) target = $region17
    $region16: #{tpu_custom_call.1} parent=1 // pred_region
      _
    $region17: #{tpu_custom_call.1} parent=1 // pred_fallthru
      _
    // Predicated region
    $region18: #{tpu_custom_call.1} parent=1 // pred_check
      _
    $region19: #{tpu_custom_call.1} parent=1 // pred_check_branch
      %47 = sbr.rel (0) target = $region21
    $region20: #{tpu_custom_call.1} parent=1 // pred_region
      %48 = dma.done [#allocation3], 128
    $region21: #{tpu_custom_call.1} parent=1 // pred_fallthru
      _
    // Predicated region
    $region22: #{tpu_custom_call.1} parent=1 // pred_check
      _
    $region23: #{tpu_custom_call.1} parent=1 // pred_check_branch
      %50 = sbr.rel (0) target = $region25
    $region24: #{tpu_custom_call.1} parent=1 // pred_region
      %51 = dma.done [#allocation6], 1024
    $region25: #{tpu_custom_call.1} parent=1 // pred_fallthru
      _
    // Predicated region
    $region26: #{tpu_custom_call.1} parent=1 // pred_check
      _
    $region27: #{tpu_custom_call.1} parent=1 // pred_check_branch
      %53 = sbr.rel (0) target = $region29
    $region28: #{tpu_custom_call.1} parent=1 // pred_region
      %54 = dma.done [#allocation6], 1024
    $region29: #{tpu_custom_call.1} parent=1 // pred_fallthru
      _
    %v55 = vld [vmem:[#allocation2] sm:$0xff]
    %v56 = vmul.f32 %v55, 1024.0
    %v57 = vfloor.f32 %v56
    %v58 = vcvt.f32.s32.to.zero.pseudo %v57
    %v59 = vcvt.s32.f32 %v58
    %v60 = vsub.f32 %v56, %v59
    %vm61 = vcmp.lt.s32.totalorder %v58, 1024
    %vm62 = vcmp.gt.s32.totalorder %v58, 0
    %v63 = vsel %vm62, %v58, 0
    %vm64 = vcmp.lt.s32.totalorder %v63, 1023
    %v65 = vsel %vm64, %v63, 1023
    %v66 = vlaneseq
    %v67 = vshrl.u32 %v66, 7
    %v68 = vsub.s32 0, %v67
    %v69 = vrot.slane %v65, %v68
    %71 = vbcast.lane.b32.xlu0 %v69, 256
    %v72 = vpop.permute.xlu0 %71
    %v73 = vlaneseq
    %v74 = vshrl.u32 %v73, 7
    %v75 = vsub.s32 1, %v74
    %v76 = vrot.slane %v65, %v75
    %78 = vbcast.lane.b32.xlu0 %v76, 256
    %v79 = vpop.permute.xlu0 %78
    %v80 = vlaneseq
    %v81 = vshrl.u32 %v80, 7
    %v82 = vsub.s32 2, %v81
    %v83 = vrot.slane %v65, %v82
    %85 = vbcast.lane.b32.xlu0 %v83, 256
    %v86 = vpop.permute.xlu0 %85
    %v87 = vlaneseq
    %v88 = vshrl.u32 %v87, 7
    %v89 = vsub.s32 3, %v88
    %v90 = vrot.slane %v65, %v89
    %92 = vbcast.lane.b32.xlu0 %v90, 256
    %v93 = vpop.permute.xlu0 %92
    %v94 = vlaneseq
    %v95 = vshrl.u32 %v94, 7
    %v96 = vsub.s32 4, %v95
    %v97 = vrot.slane %v65, %v96
    %99 = vbcast.lane.b32.xlu0 %v97, 256
    %v100 = vpop.permute.xlu0 %99
    %v101 = vlaneseq
    %v102 = vshrl.u32 %v101, 7
    %v103 = vsub.s32 5, %v102
    %v104 = vrot.slane %v65, %v103
    %106 = vbcast.lane.b32.xlu0 %v104, 256
    %v107 = vpop.permute.xlu0 %106
    %v108 = vlaneseq
    %v109 = vshrl.u32 %v108, 7
    %v110 = vsub.s32 6, %v109
    %v111 = vrot.slane %v65, %v110
    %113 = vbcast.lane.b32.xlu0 %v111, 256
    %v114 = vpop.permute.xlu0 %113
    %v115 = vlaneseq
    %v116 = vshrl.u32 %v115, 7
    %v117 = vsub.s32 7, %v116
    %v118 = vrot.slane %v65, %v117
    %120 = vbcast.lane.b32.xlu0 %v118, 256
    %v121 = vpop.permute.xlu0 %120
    %v122 = vlaneseq
    %v123 = vand.u32 %v122, 127
    %vm124 = vcmp.eq.s32.totalorder %v72, %v123
    %vm125 = vcmp.eq.s32.totalorder %v79, %v123
    %vm126 = vcmp.eq.s32.totalorder %v86, %v123
    %vm127 = vcmp.eq.s32.totalorder %v93, %v123
    %vm128 = vcmp.eq.s32.totalorder %v100, %v123
    %vm129 = vcmp.eq.s32.totalorder %v107, %v123
    %vm130 = vcmp.eq.s32.totalorder %v114, %v123
    %vm131 = vcmp.eq.s32.totalorder %v121, %v123
    %v132 = vld [vmem:[#allocation5] sm:$0xff]
    %v133 = vld [vmem:[#allocation7] sm:$0xff]
    %v134 = vsel %vm124, %v132, 0.0
    %v135 = vsel %vm125, %v132, 0.0
    %v136 = vsel %vm126, %v132, 0.0
    %v137 = vsel %vm127, %v132, 0.0
    %v138 = vsel %vm128, %v132, 0.0
    %v139 = vsel %vm129, %v132, 0.0
    %v140 = vsel %vm130, %v132, 0.0
    %v141 = vsel %vm131, %v132, 0.0
    %142 = vadd.xlane.f32.xlu0 %v134
    %v143 = vpop.xlane.xlu0 %142
    %144 = vadd.xlane.f32.xlu0 %v135
    %v145 = vpop.xlane.xlu0 %144
    %146 = vadd.xlane.f32.xlu0 %v136
    %v147 = vpop.xlane.xlu0 %146
    %148 = vadd.xlane.f32.xlu0 %v137
    %v149 = vpop.xlane.xlu0 %148
    %150 = vadd.xlane.f32.xlu0 %v138
    %v151 = vpop.xlane.xlu0 %150
    %152 = vadd.xlane.f32.xlu0 %v139
    %v153 = vpop.xlane.xlu0 %152
    %154 = vadd.xlane.f32.xlu0 %v140
    %v155 = vpop.xlane.xlu0 %154
    %156 = vadd.xlane.f32.xlu0 %v141
    %v157 = vpop.xlane.xlu0 %156
    %v158 = vadd.f32 %v143, 0.0
    %v159 = vadd.f32 %v145, 0.0
    %v160 = vadd.f32 %v147, 0.0
    %v161 = vadd.f32 %v149, 0.0
    %v162 = vadd.f32 %v151, 0.0
    %v163 = vadd.f32 %v153, 0.0
    %v164 = vadd.f32 %v155, 0.0
    %v165 = vadd.f32 %v157, 0.0
    %v166 = vsel %vm124, %v133, 0.0
    %v167 = vsel %vm125, %v133, 0.0
    %v168 = vsel %vm126, %v133, 0.0
    %v169 = vsel %vm127, %v133, 0.0
    %v170 = vsel %vm128, %v133, 0.0
    %v171 = vsel %vm129, %v133, 0.0
    %v172 = vsel %vm130, %v133, 0.0
    %v173 = vsel %vm131, %v133, 0.0
    %174 = vadd.xlane.f32.xlu0 %v166
    %v175 = vpop.xlane.xlu0 %174
    %176 = vadd.xlane.f32.xlu0 %v167
    %v177 = vpop.xlane.xlu0 %176
    %178 = vadd.xlane.f32.xlu0 %v168
    %v179 = vpop.xlane.xlu0 %178
    %180 = vadd.xlane.f32.xlu0 %v169
    %v181 = vpop.xlane.xlu0 %180
    %182 = vadd.xlane.f32.xlu0 %v170
    %v183 = vpop.xlane.xlu0 %182
    %184 = vadd.xlane.f32.xlu0 %v171
    %v185 = vpop.xlane.xlu0 %184
    %186 = vadd.xlane.f32.xlu0 %v172
    %v187 = vpop.xlane.xlu0 %186
    %188 = vadd.xlane.f32.xlu0 %v173
    %v189 = vpop.xlane.xlu0 %188
    %v190 = vadd.f32 %v175, 0.0
    %v191 = vadd.f32 %v177, 0.0
    %v192 = vadd.f32 %v179, 0.0
    %v193 = vadd.f32 %v181, 0.0
    %v194 = vadd.f32 %v183, 0.0
    %v195 = vadd.f32 %v185, 0.0
    %v196 = vadd.f32 %v187, 0.0
    %v197 = vadd.f32 %v189, 0.0
    %v198 = vadd.s32 %v123, 128
    %vm199 = vcmp.eq.s32.totalorder %v72, %v198
    %vm200 = vcmp.eq.s32.totalorder %v79, %v198
    %vm201 = vcmp.eq.s32.totalorder %v86, %v198
    %vm202 = vcmp.eq.s32.totalorder %v93, %v198
    %vm203 = vcmp.eq.s32.totalorder %v100, %v198
    %vm204 = vcmp.eq.s32.totalorder %v107, %v198
    %vm205 = vcmp.eq.s32.totalorder %v114, %v198
    %vm206 = vcmp.eq.s32.totalorder %v121, %v198
    %v207 = vld [vmem:[#allocation5 + $0x8] sm:$0xff]
    %v208 = vld [vmem:[#allocation7 + $0x8] sm:$0xff]
    %v209 = vsel %vm199, %v207, 0.0
    %v210 = vsel %vm200, %v207, 0.0
    %v211 = vsel %vm201, %v207, 0.0
    %v212 = vsel %vm202, %v207, 0.0
    %v213 = vsel %vm203, %v207, 0.0
    %v214 = vsel %vm204, %v207, 0.0
    %v215 = vsel %vm205, %v207, 0.0
    %v216 = vsel %vm206, %v207, 0.0
    %217 = vadd.xlane.f32.xlu0 %v209
    %v218 = vpop.xlane.xlu0 %217
    %219 = vadd.xlane.f32.xlu0 %v210
    %v220 = vpop.xlane.xlu0 %219
    %221 = vadd.xlane.f32.xlu0 %v211
    %v222 = vpop.xlane.xlu0 %221
    %223 = vadd.xlane.f32.xlu0 %v212
    %v224 = vpop.xlane.xlu0 %223
    %225 = vadd.xlane.f32.xlu0 %v213
    %v226 = vpop.xlane.xlu0 %225
    %227 = vadd.xlane.f32.xlu0 %v214
    %v228 = vpop.xlane.xlu0 %227
    %229 = vadd.xlane.f32.xlu0 %v215
    %v230 = vpop.xlane.xlu0 %229
    %231 = vadd.xlane.f32.xlu0 %v216
    %v232 = vpop.xlane.xlu0 %231
    %v233 = vadd.f32 %v158, %v218
    %v234 = vadd.f32 %v159, %v220
    %v235 = vadd.f32 %v160, %v222
    %v236 = vadd.f32 %v161, %v224
    %v237 = vadd.f32 %v162, %v226
    %v238 = vadd.f32 %v163, %v228
    %v239 = vadd.f32 %v164, %v230
    %v240 = vadd.f32 %v165, %v232
    %v241 = vsel %vm199, %v208, 0.0
    %v242 = vsel %vm200, %v208, 0.0
    %v243 = vsel %vm201, %v208, 0.0
    %v244 = vsel %vm202, %v208, 0.0
    %v245 = vsel %vm203, %v208, 0.0
    %v246 = vsel %vm204, %v208, 0.0
    %v247 = vsel %vm205, %v208, 0.0
    %v248 = vsel %vm206, %v208, 0.0
    %249 = vadd.xlane.f32.xlu0 %v241
    %v250 = vpop.xlane.xlu0 %249
    %251 = vadd.xlane.f32.xlu0 %v242
    %v252 = vpop.xlane.xlu0 %251
    %253 = vadd.xlane.f32.xlu0 %v243
    %v254 = vpop.xlane.xlu0 %253
    %255 = vadd.xlane.f32.xlu0 %v244
    %v256 = vpop.xlane.xlu0 %255
    %257 = vadd.xlane.f32.xlu0 %v245
    %v258 = vpop.xlane.xlu0 %257
    %259 = vadd.xlane.f32.xlu0 %v246
    %v260 = vpop.xlane.xlu0 %259
    %261 = vadd.xlane.f32.xlu0 %v247
    %v262 = vpop.xlane.xlu0 %261
    %263 = vadd.xlane.f32.xlu0 %v248
    %v264 = vpop.xlane.xlu0 %263
    %v265 = vadd.f32 %v190, %v250
    %v266 = vadd.f32 %v191, %v252
    %v267 = vadd.f32 %v192, %v254
    %v268 = vadd.f32 %v193, %v256
    %v269 = vadd.f32 %v194, %v258
    %v270 = vadd.f32 %v195, %v260
    %v271 = vadd.f32 %v196, %v262
    %v272 = vadd.f32 %v197, %v264
    %v273 = vadd.s32 %v123, 256
    %vm274 = vcmp.eq.s32.totalorder %v72, %v273
    %vm275 = vcmp.eq.s32.totalorder %v79, %v273
    %vm276 = vcmp.eq.s32.totalorder %v86, %v273
    %vm277 = vcmp.eq.s32.totalorder %v93, %v273
    %vm278 = vcmp.eq.s32.totalorder %v100, %v273
    %vm279 = vcmp.eq.s32.totalorder %v107, %v273
    %vm280 = vcmp.eq.s32.totalorder %v114, %v273
    %vm281 = vcmp.eq.s32.totalorder %v121, %v273
    %v282 = vld [vmem:[#allocation5 + $0x10] sm:$0xff]
    %v283 = vld [vmem:[#allocation7 + $0x10] sm:$0xff]
    %v284 = vsel %vm274, %v282, 0.0
    %v285 = vsel %vm275, %v282, 0.0
    %v286 = vsel %vm276, %v282, 0.0
    %v287 = vsel %vm277, %v282, 0.0
    %v288 = vsel %vm278, %v282, 0.0
    %v289 = vsel %vm279, %v282, 0.0
    %v290 = vsel %vm280, %v282, 0.0
    %v291 = vsel %vm281, %v282, 0.0
    %292 = vadd.xlane.f32.xlu0 %v284
    %v293 = vpop.xlane.xlu0 %292
    %294 = vadd.xlane.f32.xlu0 %v285
    %v295 = vpop.xlane.xlu0 %294
    %296 = vadd.xlane.f32.xlu0 %v286
    %v297 = vpop.xlane.xlu0 %296
    %298 = vadd.xlane.f32.xlu0 %v287
    %v299 = vpop.xlane.xlu0 %298
    %300 = vadd.xlane.f32.xlu0 %v288
    %v301 = vpop.xlane.xlu0 %300
    %302 = vadd.xlane.f32.xlu0 %v289
    %v303 = vpop.xlane.xlu0 %302
    %304 = vadd.xlane.f32.xlu0 %v290
    %v305 = vpop.xlane.xlu0 %304
    %306 = vadd.xlane.f32.xlu0 %v291
    %v307 = vpop.xlane.xlu0 %306
    %v308 = vadd.f32 %v233, %v293
    %v309 = vadd.f32 %v234, %v295
    %v310 = vadd.f32 %v235, %v297
    %v311 = vadd.f32 %v236, %v299
    %v312 = vadd.f32 %v237, %v301
    %v313 = vadd.f32 %v238, %v303
    %v314 = vadd.f32 %v239, %v305
    %v315 = vadd.f32 %v240, %v307
    %v316 = vsel %vm274, %v283, 0.0
    %v317 = vsel %vm275, %v283, 0.0
    %v318 = vsel %vm276, %v283, 0.0
    %v319 = vsel %vm277, %v283, 0.0
    %v320 = vsel %vm278, %v283, 0.0
    %v321 = vsel %vm279, %v283, 0.0
    %v322 = vsel %vm280, %v283, 0.0
    %v323 = vsel %vm281, %v283, 0.0
    %324 = vadd.xlane.f32.xlu0 %v316
    %v325 = vpop.xlane.xlu0 %324
    %326 = vadd.xlane.f32.xlu0 %v317
    %v327 = vpop.xlane.xlu0 %326
    %328 = vadd.xlane.f32.xlu0 %v318
    %v329 = vpop.xlane.xlu0 %328
    %330 = vadd.xlane.f32.xlu0 %v319
    %v331 = vpop.xlane.xlu0 %330
    %332 = vadd.xlane.f32.xlu0 %v320
    %v333 = vpop.xlane.xlu0 %332
    %334 = vadd.xlane.f32.xlu0 %v321
    %v335 = vpop.xlane.xlu0 %334
    %336 = vadd.xlane.f32.xlu0 %v322
    %v337 = vpop.xlane.xlu0 %336
    %338 = vadd.xlane.f32.xlu0 %v323
    %v339 = vpop.xlane.xlu0 %338
    %v340 = vadd.f32 %v265, %v325
    %v341 = vadd.f32 %v266, %v327
    %v342 = vadd.f32 %v267, %v329
    %v343 = vadd.f32 %v268, %v331
    %v344 = vadd.f32 %v269, %v333
    %v345 = vadd.f32 %v270, %v335
    %v346 = vadd.f32 %v271, %v337
    %v347 = vadd.f32 %v272, %v339
    %v348 = vadd.s32 %v123, 384
    %vm349 = vcmp.eq.s32.totalorder %v72, %v348
    %vm350 = vcmp.eq.s32.totalorder %v79, %v348
    %vm351 = vcmp.eq.s32.totalorder %v86, %v348
    %vm352 = vcmp.eq.s32.totalorder %v93, %v348
    %vm353 = vcmp.eq.s32.totalorder %v100, %v348
    %vm354 = vcmp.eq.s32.totalorder %v107, %v348
    %vm355 = vcmp.eq.s32.totalorder %v114, %v348
    %vm356 = vcmp.eq.s32.totalorder %v121, %v348
    %v357 = vld [vmem:[#allocation5 + $0x18] sm:$0xff]
    %v358 = vld [vmem:[#allocation7 + $0x18] sm:$0xff]
    %v359 = vsel %vm349, %v357, 0.0
    %v360 = vsel %vm350, %v357, 0.0
    %v361 = vsel %vm351, %v357, 0.0
    %v362 = vsel %vm352, %v357, 0.0
    %v363 = vsel %vm353, %v357, 0.0
    %v364 = vsel %vm354, %v357, 0.0
    %v365 = vsel %vm355, %v357, 0.0
    %v366 = vsel %vm356, %v357, 0.0
    %367 = vadd.xlane.f32.xlu0 %v359
    %v368 = vpop.xlane.xlu0 %367
    %369 = vadd.xlane.f32.xlu0 %v360
    %v370 = vpop.xlane.xlu0 %369
    %371 = vadd.xlane.f32.xlu0 %v361
    %v372 = vpop.xlane.xlu0 %371
    %373 = vadd.xlane.f32.xlu0 %v362
    %v374 = vpop.xlane.xlu0 %373
    %375 = vadd.xlane.f32.xlu0 %v363
    %v376 = vpop.xlane.xlu0 %375
    %377 = vadd.xlane.f32.xlu0 %v364
    %v378 = vpop.xlane.xlu0 %377
    %379 = vadd.xlane.f32.xlu0 %v365
    %v380 = vpop.xlane.xlu0 %379
    %381 = vadd.xlane.f32.xlu0 %v366
    %v382 = vpop.xlane.xlu0 %381
    %v383 = vadd.f32 %v308, %v368
    %v384 = vadd.f32 %v309, %v370
    %v385 = vadd.f32 %v310, %v372
    %v386 = vadd.f32 %v311, %v374
    %v387 = vadd.f32 %v312, %v376
    %v388 = vadd.f32 %v313, %v378
    %v389 = vadd.f32 %v314, %v380
    %v390 = vadd.f32 %v315, %v382
    %v391 = vsel %vm349, %v358, 0.0
    %v392 = vsel %vm350, %v358, 0.0
    %v393 = vsel %vm351, %v358, 0.0
    %v394 = vsel %vm352, %v358, 0.0
    %v395 = vsel %vm353, %v358, 0.0
    %v396 = vsel %vm354, %v358, 0.0
    %v397 = vsel %vm355, %v358, 0.0
    %v398 = vsel %vm356, %v358, 0.0
    %399 = vadd.xlane.f32.xlu0 %v391
    %v400 = vpop.xlane.xlu0 %399
    %401 = vadd.xlane.f32.xlu0 %v392
    %v402 = vpop.xlane.xlu0 %401
    %403 = vadd.xlane.f32.xlu0 %v393
    %v404 = vpop.xlane.xlu0 %403
    %405 = vadd.xlane.f32.xlu0 %v394
    %v406 = vpop.xlane.xlu0 %405
    %407 = vadd.xlane.f32.xlu0 %v395
    %v408 = vpop.xlane.xlu0 %407
    %409 = vadd.xlane.f32.xlu0 %v396
    %v410 = vpop.xlane.xlu0 %409
    %411 = vadd.xlane.f32.xlu0 %v397
    %v412 = vpop.xlane.xlu0 %411
    %413 = vadd.xlane.f32.xlu0 %v398
    %v414 = vpop.xlane.xlu0 %413
    %v415 = vadd.f32 %v340, %v400
    %v416 = vadd.f32 %v341, %v402
    %v417 = vadd.f32 %v342, %v404
    %v418 = vadd.f32 %v343, %v406
    %v419 = vadd.f32 %v344, %v408
    %v420 = vadd.f32 %v345, %v410
    %v421 = vadd.f32 %v346, %v412
    %v422 = vadd.f32 %v347, %v414
    %v423 = vadd.s32 %v123, 512
    %vm424 = vcmp.eq.s32.totalorder %v72, %v423
    %vm425 = vcmp.eq.s32.totalorder %v79, %v423
    %vm426 = vcmp.eq.s32.totalorder %v86, %v423
    %vm427 = vcmp.eq.s32.totalorder %v93, %v423
    %vm428 = vcmp.eq.s32.totalorder %v100, %v423
    %vm429 = vcmp.eq.s32.totalorder %v107, %v423
    %vm430 = vcmp.eq.s32.totalorder %v114, %v423
    %vm431 = vcmp.eq.s32.totalorder %v121, %v423
    %v432 = vld [vmem:[#allocation5 + $0x20] sm:$0xff]
    %v433 = vld [vmem:[#allocation7 + $0x20] sm:$0xff]
    %v434 = vsel %vm424, %v432, 0.0
    %v435 = vsel %vm425, %v432, 0.0
    %v436 = vsel %vm426, %v432, 0.0
    %v437 = vsel %vm427, %v432, 0.0
    %v438 = vsel %vm428, %v432, 0.0
    %v439 = vsel %vm429, %v432, 0.0
    %v440 = vsel %vm430, %v432, 0.0
    %v441 = vsel %vm431, %v432, 0.0
    %442 = vadd.xlane.f32.xlu0 %v434
    %v443 = vpop.xlane.xlu0 %442
    %444 = vadd.xlane.f32.xlu0 %v435
    %v445 = vpop.xlane.xlu0 %444
    %446 = vadd.xlane.f32.xlu0 %v436
    %v447 = vpop.xlane.xlu0 %446
    %448 = vadd.xlane.f32.xlu0 %v437
    %v449 = vpop.xlane.xlu0 %448
    %450 = vadd.xlane.f32.xlu0 %v438
    %v451 = vpop.xlane.xlu0 %450
    %452 = vadd.xlane.f32.xlu0 %v439
    %v453 = vpop.xlane.xlu0 %452
    %454 = vadd.xlane.f32.xlu0 %v440
    %v455 = vpop.xlane.xlu0 %454
    %456 = vadd.xlane.f32.xlu0 %v441
    %v457 = vpop.xlane.xlu0 %456
    %v458 = vadd.f32 %v383, %v443
    %v459 = vadd.f32 %v384, %v445
    %v460 = vadd.f32 %v385, %v447
    %v461 = vadd.f32 %v386, %v449
    %v462 = vadd.f32 %v387, %v451
    %v463 = vadd.f32 %v388, %v453
    %v464 = vadd.f32 %v389, %v455
    %v465 = vadd.f32 %v390, %v457
    %v466 = vsel %vm424, %v433, 0.0
    %v467 = vsel %vm425, %v433, 0.0
    %v468 = vsel %vm426, %v433, 0.0
    %v469 = vsel %vm427, %v433, 0.0
    %v470 = vsel %vm428, %v433, 0.0
    %v471 = vsel %vm429, %v433, 0.0
    %v472 = vsel %vm430, %v433, 0.0
    %v473 = vsel %vm431, %v433, 0.0
    %474 = vadd.xlane.f32.xlu0 %v466
    %v475 = vpop.xlane.xlu0 %474
    %476 = vadd.xlane.f32.xlu0 %v467
    %v477 = vpop.xlane.xlu0 %476
    %478 = vadd.xlane.f32.xlu0 %v468
    %v479 = vpop.xlane.xlu0 %478
    %480 = vadd.xlane.f32.xlu0 %v469
    %v481 = vpop.xlane.xlu0 %480
    %482 = vadd.xlane.f32.xlu0 %v470
    %v483 = vpop.xlane.xlu0 %482
    %484 = vadd.xlane.f32.xlu0 %v471
    %v485 = vpop.xlane.xlu0 %484
    %486 = vadd.xlane.f32.xlu0 %v472
    %v487 = vpop.xlane.xlu0 %486
    %488 = vadd.xlane.f32.xlu0 %v473
    %v489 = vpop.xlane.xlu0 %488
    %v490 = vadd.f32 %v415, %v475
    %v491 = vadd.f32 %v416, %v477
    %v492 = vadd.f32 %v417, %v479
    %v493 = vadd.f32 %v418, %v481
    %v494 = vadd.f32 %v419, %v483
    %v495 = vadd.f32 %v420, %v485
    %v496 = vadd.f32 %v421, %v487
    %v497 = vadd.f32 %v422, %v489
    %v498 = vadd.s32 %v123, 640
    %vm499 = vcmp.eq.s32.totalorder %v72, %v498
    %vm500 = vcmp.eq.s32.totalorder %v79, %v498
    %vm501 = vcmp.eq.s32.totalorder %v86, %v498
    %vm502 = vcmp.eq.s32.totalorder %v93, %v498
    %vm503 = vcmp.eq.s32.totalorder %v100, %v498
    %vm504 = vcmp.eq.s32.totalorder %v107, %v498
    %vm505 = vcmp.eq.s32.totalorder %v114, %v498
    %vm506 = vcmp.eq.s32.totalorder %v121, %v498
    %v507 = vld [vmem:[#allocation5 + $0x28] sm:$0xff]
    %v508 = vld [vmem:[#allocation7 + $0x28] sm:$0xff]
    %v509 = vsel %vm499, %v507, 0.0
    %v510 = vsel %vm500, %v507, 0.0
    %v511 = vsel %vm501, %v507, 0.0
    %v512 = vsel %vm502, %v507, 0.0
    %v513 = vsel %vm503, %v507, 0.0
    %v514 = vsel %vm504, %v507, 0.0
    %v515 = vsel %vm505, %v507, 0.0
    %v516 = vsel %vm506, %v507, 0.0
    %517 = vadd.xlane.f32.xlu0 %v509
    %v518 = vpop.xlane.xlu0 %517
    %519 = vadd.xlane.f32.xlu0 %v510
    %v520 = vpop.xlane.xlu0 %519
    %521 = vadd.xlane.f32.xlu0 %v511
    %v522 = vpop.xlane.xlu0 %521
    %523 = vadd.xlane.f32.xlu0 %v512
    %v524 = vpop.xlane.xlu0 %523
    %525 = vadd.xlane.f32.xlu0 %v513
    %v526 = vpop.xlane.xlu0 %525
    %527 = vadd.xlane.f32.xlu0 %v514
    %v528 = vpop.xlane.xlu0 %527
    %529 = vadd.xlane.f32.xlu0 %v515
    %v530 = vpop.xlane.xlu0 %529
    %531 = vadd.xlane.f32.xlu0 %v516
    %v532 = vpop.xlane.xlu0 %531
    %v533 = vadd.f32 %v458, %v518
    %v534 = vadd.f32 %v459, %v520
    %v535 = vadd.f32 %v460, %v522
    %v536 = vadd.f32 %v461, %v524
    %v537 = vadd.f32 %v462, %v526
    %v538 = vadd.f32 %v463, %v528
    %v539 = vadd.f32 %v464, %v530
    %v540 = vadd.f32 %v465, %v532
    %v541 = vsel %vm499, %v508, 0.0
    %v542 = vsel %vm500, %v508, 0.0
    %v543 = vsel %vm501, %v508, 0.0
    %v544 = vsel %vm502, %v508, 0.0
    %v545 = vsel %vm503, %v508, 0.0
    %v546 = vsel %vm504, %v508, 0.0
    %v547 = vsel %vm505, %v508, 0.0
    %v548 = vsel %vm506, %v508, 0.0
    %549 = vadd.xlane.f32.xlu0 %v541
    %v550 = vpop.xlane.xlu0 %549
    %551 = vadd.xlane.f32.xlu0 %v542
    %v552 = vpop.xlane.xlu0 %551
    %553 = vadd.xlane.f32.xlu0 %v543
    %v554 = vpop.xlane.xlu0 %553
    %555 = vadd.xlane.f32.xlu0 %v544
    %v556 = vpop.xlane.xlu0 %555
    %557 = vadd.xlane.f32.xlu0 %v545
    %v558 = vpop.xlane.xlu0 %557
    %559 = vadd.xlane.f32.xlu0 %v546
    %v560 = vpop.xlane.xlu0 %559
    %561 = vadd.xlane.f32.xlu0 %v547
    %v562 = vpop.xlane.xlu0 %561
    %563 = vadd.xlane.f32.xlu0 %v548
    %v564 = vpop.xlane.xlu0 %563
    %v565 = vadd.f32 %v490, %v550
    %v566 = vadd.f32 %v491, %v552
    %v567 = vadd.f32 %v492, %v554
    %v568 = vadd.f32 %v493, %v556
    %v569 = vadd.f32 %v494, %v558
    %v570 = vadd.f32 %v495, %v560
    %v571 = vadd.f32 %v496, %v562
    %v572 = vadd.f32 %v497, %v564
    %v573 = vadd.s32 %v123, 768
    %vm574 = vcmp.eq.s32.totalorder %v72, %v573
    %vm575 = vcmp.eq.s32.totalorder %v79, %v573
    %vm576 = vcmp.eq.s32.totalorder %v86, %v573
    %vm577 = vcmp.eq.s32.totalorder %v93, %v573
    %vm578 = vcmp.eq.s32.totalorder %v100, %v573
    %vm579 = vcmp.eq.s32.totalorder %v107, %v573
    %vm580 = vcmp.eq.s32.totalorder %v114, %v573
    %vm581 = vcmp.eq.s32.totalorder %v121, %v573
    %v582 = vld [vmem:[#allocation5 + $0x30] sm:$0xff]
    %v583 = vld [vmem:[#allocation7 + $0x30] sm:$0xff]
    %v584 = vsel %vm574, %v582, 0.0
    %v585 = vsel %vm575, %v582, 0.0
    %v586 = vsel %vm576, %v582, 0.0
    %v587 = vsel %vm577, %v582, 0.0
    %v588 = vsel %vm578, %v582, 0.0
    %v589 = vsel %vm579, %v582, 0.0
    %v590 = vsel %vm580, %v582, 0.0
    %v591 = vsel %vm581, %v582, 0.0
    %592 = vadd.xlane.f32.xlu0 %v584
    %v593 = vpop.xlane.xlu0 %592
    %594 = vadd.xlane.f32.xlu0 %v585
    %v595 = vpop.xlane.xlu0 %594
    %596 = vadd.xlane.f32.xlu0 %v586
    %v597 = vpop.xlane.xlu0 %596
    %598 = vadd.xlane.f32.xlu0 %v587
    %v599 = vpop.xlane.xlu0 %598
    %600 = vadd.xlane.f32.xlu0 %v588
    %v601 = vpop.xlane.xlu0 %600
    %602 = vadd.xlane.f32.xlu0 %v589
    %v603 = vpop.xlane.xlu0 %602
    %604 = vadd.xlane.f32.xlu0 %v590
    %v605 = vpop.xlane.xlu0 %604
    %606 = vadd.xlane.f32.xlu0 %v591
    %v607 = vpop.xlane.xlu0 %606
    %v608 = vadd.f32 %v533, %v593
    %v609 = vadd.f32 %v534, %v595
    %v610 = vadd.f32 %v535, %v597
    %v611 = vadd.f32 %v536, %v599
    %v612 = vadd.f32 %v537, %v601
    %v613 = vadd.f32 %v538, %v603
    %v614 = vadd.f32 %v539, %v605
    %v615 = vadd.f32 %v540, %v607
    %v616 = vsel %vm574, %v583, 0.0
    %v617 = vsel %vm575, %v583, 0.0
    %v618 = vsel %vm576, %v583, 0.0
    %v619 = vsel %vm577, %v583, 0.0
    %v620 = vsel %vm578, %v583, 0.0
    %v621 = vsel %vm579, %v583, 0.0
    %v622 = vsel %vm580, %v583, 0.0
    %v623 = vsel %vm581, %v583, 0.0
    %624 = vadd.xlane.f32.xlu0 %v616
    %v625 = vpop.xlane.xlu0 %624
    %626 = vadd.xlane.f32.xlu0 %v617
    %v627 = vpop.xlane.xlu0 %626
    %628 = vadd.xlane.f32.xlu0 %v618
    %v629 = vpop.xlane.xlu0 %628
    %630 = vadd.xlane.f32.xlu0 %v619
    %v631 = vpop.xlane.xlu0 %630
    %632 = vadd.xlane.f32.xlu0 %v620
    %v633 = vpop.xlane.xlu0 %632
    %634 = vadd.xlane.f32.xlu0 %v621
    %v635 = vpop.xlane.xlu0 %634
    %636 = vadd.xlane.f32.xlu0 %v622
    %v637 = vpop.xlane.xlu0 %636
    %638 = vadd.xlane.f32.xlu0 %v623
    %v639 = vpop.xlane.xlu0 %638
    %v640 = vadd.f32 %v565, %v625
    %v641 = vadd.f32 %v566, %v627
    %v642 = vadd.f32 %v567, %v629
    %v643 = vadd.f32 %v568, %v631
    %v644 = vadd.f32 %v569, %v633
    %v645 = vadd.f32 %v570, %v635
    %v646 = vadd.f32 %v571, %v637
    %v647 = vadd.f32 %v572, %v639
    %v648 = vadd.s32 %v123, 896
    %vm649 = vcmp.eq.s32.totalorder %v72, %v648
    %vm650 = vcmp.eq.s32.totalorder %v79, %v648
    %vm651 = vcmp.eq.s32.totalorder %v86, %v648
    %vm652 = vcmp.eq.s32.totalorder %v93, %v648
    %vm653 = vcmp.eq.s32.totalorder %v100, %v648
    %vm654 = vcmp.eq.s32.totalorder %v107, %v648
    %vm655 = vcmp.eq.s32.totalorder %v114, %v648
    %vm656 = vcmp.eq.s32.totalorder %v121, %v648
    %v657 = vld [vmem:[#allocation5 + $0x38] sm:$0xff]
    %v658 = vld [vmem:[#allocation7 + $0x38] sm:$0xff]
    %v659 = vsel %vm649, %v657, 0.0
    %v660 = vsel %vm650, %v657, 0.0
    %v661 = vsel %vm651, %v657, 0.0
    %v662 = vsel %vm652, %v657, 0.0
    %v663 = vsel %vm653, %v657, 0.0
    %v664 = vsel %vm654, %v657, 0.0
    %v665 = vsel %vm655, %v657, 0.0
    %v666 = vsel %vm656, %v657, 0.0
    %667 = vadd.xlane.f32.xlu0 %v659
    %v668 = vpop.xlane.xlu0 %667
    %669 = vadd.xlane.f32.xlu0 %v660
    %v670 = vpop.xlane.xlu0 %669
    %671 = vadd.xlane.f32.xlu0 %v661
    %v672 = vpop.xlane.xlu0 %671
    %673 = vadd.xlane.f32.xlu0 %v662
    %v674 = vpop.xlane.xlu0 %673
    %675 = vadd.xlane.f32.xlu0 %v663
    %v676 = vpop.xlane.xlu0 %675
    %677 = vadd.xlane.f32.xlu0 %v664
    %v678 = vpop.xlane.xlu0 %677
    %679 = vadd.xlane.f32.xlu0 %v665
    %v680 = vpop.xlane.xlu0 %679
    %681 = vadd.xlane.f32.xlu0 %v666
    %v682 = vpop.xlane.xlu0 %681
    %v683 = vadd.f32 %v608, %v668
    %v684 = vadd.f32 %v609, %v670
    %v685 = vadd.f32 %v610, %v672
    %v686 = vadd.f32 %v611, %v674
    %v687 = vadd.f32 %v612, %v676
    %v688 = vadd.f32 %v613, %v678
    %v689 = vadd.f32 %v614, %v680
    %v690 = vadd.f32 %v615, %v682
    %v691 = vsel %vm649, %v658, 0.0
    %v692 = vsel %vm650, %v658, 0.0
    %v693 = vsel %vm651, %v658, 0.0
    %v694 = vsel %vm652, %v658, 0.0
    %v695 = vsel %vm653, %v658, 0.0
    %v696 = vsel %vm654, %v658, 0.0
    %v697 = vsel %vm655, %v658, 0.0
    %v698 = vsel %vm656, %v658, 0.0
    %699 = vadd.xlane.f32.xlu0 %v691
    %v700 = vpop.xlane.xlu0 %699
    %701 = vadd.xlane.f32.xlu0 %v692
    %v702 = vpop.xlane.xlu0 %701
    %703 = vadd.xlane.f32.xlu0 %v693
    %v704 = vpop.xlane.xlu0 %703
    %705 = vadd.xlane.f32.xlu0 %v694
    %v706 = vpop.xlane.xlu0 %705
    %707 = vadd.xlane.f32.xlu0 %v695
    %v708 = vpop.xlane.xlu0 %707
    %709 = vadd.xlane.f32.xlu0 %v696
    %v710 = vpop.xlane.xlu0 %709
    %711 = vadd.xlane.f32.xlu0 %v697
    %v712 = vpop.xlane.xlu0 %711
    %713 = vadd.xlane.f32.xlu0 %v698
    %v714 = vpop.xlane.xlu0 %713
    %v715 = vadd.f32 %v640, %v700
    %v716 = vadd.f32 %v641, %v702
    %v717 = vadd.f32 %v642, %v704
    %v718 = vadd.f32 %v643, %v706
    %v719 = vadd.f32 %v644, %v708
    %v720 = vadd.f32 %v645, %v710
    %v721 = vadd.f32 %v646, %v712
    %v722 = vadd.f32 %v647, %v714
    %v724 = vlaneseq
    %v725 = vshrl.u32 %v724, 7
    %v726 = vsub.s32 0, %v725
    %v727 = vrot.slane %v60, %v726
    %729 = vbcast.lane.b32.xlu0 %v727, 256
    %v730 = vpop.permute.xlu0 %729
    %v731 = vlaneseq
    %v732 = vshrl.u32 %v731, 7
    %v733 = vsub.s32 1, %v732
    %v734 = vrot.slane %v60, %v733
    %736 = vbcast.lane.b32.xlu0 %v734, 256
    %v737 = vpop.permute.xlu0 %736
    %v738 = vlaneseq
    %v739 = vshrl.u32 %v738, 7
    %v740 = vsub.s32 2, %v739
    %v741 = vrot.slane %v60, %v740
    %743 = vbcast.lane.b32.xlu0 %v741, 256
    %v744 = vpop.permute.xlu0 %743
    %v745 = vlaneseq
    %v746 = vshrl.u32 %v745, 7
    %v747 = vsub.s32 3, %v746
    %v748 = vrot.slane %v60, %v747
    %750 = vbcast.lane.b32.xlu0 %v748, 256
    %v751 = vpop.permute.xlu0 %750
    %v752 = vlaneseq
    %v753 = vshrl.u32 %v752, 7
    %v754 = vsub.s32 4, %v753
    %v755 = vrot.slane %v60, %v754
    %757 = vbcast.lane.b32.xlu0 %v755, 256
    %v758 = vpop.permute.xlu0 %757
    %v759 = vlaneseq
    %v760 = vshrl.u32 %v759, 7
    %v761 = vsub.s32 5, %v760
    %v762 = vrot.slane %v60, %v761
    %764 = vbcast.lane.b32.xlu0 %v762, 256
    %v765 = vpop.permute.xlu0 %764
    %v766 = vlaneseq
    %v767 = vshrl.u32 %v766, 7
    %v768 = vsub.s32 6, %v767
    %v769 = vrot.slane %v60, %v768
    %771 = vbcast.lane.b32.xlu0 %v769, 256
    %v772 = vpop.permute.xlu0 %771
    %v773 = vlaneseq
    %v774 = vshrl.u32 %v773, 7
    %v775 = vsub.s32 7, %v774
    %v776 = vrot.slane %v60, %v775
    %778 = vbcast.lane.b32.xlu0 %v776, 256
    %v779 = vpop.permute.xlu0 %778
    %v788 = vmul.f32 %v715, %v730
    %v789 = vmul.f32 %v716, %v737
    %v790 = vmul.f32 %v717, %v744
    %v791 = vmul.f32 %v718, %v751
    %v792 = vmul.f32 %v719, %v758
    %v793 = vmul.f32 %v720, %v765
    %v794 = vmul.f32 %v721, %v772
    %v795 = vmul.f32 %v722, %v779
    %v796 = vadd.f32 %v683, %v788
    %v797 = vadd.f32 %v684, %v789
    %v798 = vadd.f32 %v685, %v790
    %v799 = vadd.f32 %v686, %v791
    %v800 = vadd.f32 %v687, %v792
    %v801 = vadd.f32 %v688, %v793
    %v802 = vadd.f32 %v689, %v794
    %v803 = vadd.f32 %v690, %v795
    %v804 = vld [vmem:[%s3] sm:$0x1]
    %v806 = vlaneseq
    %v807 = vshrl.u32 %v806, 7
    %v808 = vsub.s32 0, %v807
    %v809 = vrot.slane %v804, %v808
    %819 = vset.pattern.permute.xlu0 0
    %820 = vperm.xlu0 %819, %v796
    %v821 = vpop.permute.xlu0 %820
    %822 = vset.pattern.permute.xlu0 0
    %823 = vperm.xlu0 %822, %v797
    %v824 = vpop.permute.xlu0 %823
    %825 = vset.pattern.permute.xlu0 0
    %826 = vperm.xlu0 %825, %v798
    %v827 = vpop.permute.xlu0 %826
    %828 = vset.pattern.permute.xlu0 0
    %829 = vperm.xlu0 %828, %v799
    %v830 = vpop.permute.xlu0 %829
    %831 = vset.pattern.permute.xlu0 0
    %832 = vperm.xlu0 %831, %v800
    %v833 = vpop.permute.xlu0 %832
    %834 = vset.pattern.permute.xlu0 0
    %835 = vperm.xlu0 %834, %v801
    %v836 = vpop.permute.xlu0 %835
    %837 = vset.pattern.permute.xlu0 0
    %838 = vperm.xlu0 %837, %v802
    %v839 = vpop.permute.xlu0 %838
    %840 = vset.pattern.permute.xlu0 0
    %841 = vperm.xlu0 %840, %v803
    %v842 = vpop.permute.xlu0 %841
    %v843 = vlaneseq
    %v844 = vshrl.u32 %v843, 7
    %v845 = vsub.s32 %v123, %v844
    %v846 = vrot.slane %v821, %v845
    %v847 = vlaneseq
    %v848 = vshrl.u32 %v847, 7
    %v849 = vsub.s32 %v123, %v848
    %v850 = vrot.slane %v824, %v849
    %v851 = vlaneseq
    %v852 = vshrl.u32 %v851, 7
    %v853 = vsub.s32 %v123, %v852
    %v854 = vrot.slane %v827, %v853
    %v855 = vlaneseq
    %v856 = vshrl.u32 %v855, 7
    %v857 = vsub.s32 %v123, %v856
    %v858 = vrot.slane %v830, %v857
    %v859 = vlaneseq
    %v860 = vshrl.u32 %v859, 7
    %v861 = vsub.s32 %v123, %v860
    %v862 = vrot.slane %v833, %v861
    %v863 = vlaneseq
    %v864 = vshrl.u32 %v863, 7
    %v865 = vsub.s32 %v123, %v864
    %v866 = vrot.slane %v836, %v865
    %v867 = vlaneseq
    %v868 = vshrl.u32 %v867, 7
    %v869 = vsub.s32 %v123, %v868
    %v870 = vrot.slane %v839, %v869
    %v871 = vlaneseq
    %v872 = vshrl.u32 %v871, 7
    %v873 = vsub.s32 %v123, %v872
    %v874 = vrot.slane %v842, %v873
    %vm875 = vcmask 1041409
    %v876 = vsel %vm875, %v850, %v846
    %vm877 = vcmask 1042434
    %v878 = vsel %vm877, %v854, %v876
    %vm879 = vcmask 1043459
    %v880 = vsel %vm879, %v858, %v878
    %vm881 = vcmask 1044484
    %v882 = vsel %vm881, %v862, %v880
    %vm883 = vcmask 1045509
    %v884 = vsel %vm883, %v866, %v882
    %vm885 = vcmask 1046534
    %v886 = vsel %vm885, %v870, %v884
    %vm887 = vcmask 1047559
    %v888 = vsel %vm887, %v874, %v886
    %v890 = vsel %vm61, %v888, %v809
    %v891 = vmul.f32 %v715, 1024.0
    %v892 = vmul.f32 %v716, 1024.0
    %v893 = vmul.f32 %v717, 1024.0
    %v894 = vmul.f32 %v718, 1024.0
    %v895 = vmul.f32 %v719, 1024.0
    %v896 = vmul.f32 %v720, 1024.0
    %v897 = vmul.f32 %v721, 1024.0
    %v898 = vmul.f32 %v722, 1024.0
    %v899 = vlog2.pop %v891
    %v900 = vmul.f32 %v899, 0.6931472
    %v901 = vlog2.pop %v892
    %v902 = vmul.f32 %v901, 0.6931472
    %v903 = vlog2.pop %v893
    %v904 = vmul.f32 %v903, 0.6931472
    %v905 = vlog2.pop %v894
    %v906 = vmul.f32 %v905, 0.6931472
    %v907 = vlog2.pop %v895
    %v908 = vmul.f32 %v907, 0.6931472
    %v909 = vlog2.pop %v896
    %v910 = vmul.f32 %v909, 0.6931472
    %v911 = vlog2.pop %v897
    %v912 = vmul.f32 %v911, 0.6931472
    %v913 = vlog2.pop %v898
    %v914 = vmul.f32 %v913, 0.6931472
    %v923 = vlaneseq
    %v924 = vshrl.u32 %v923, 7
    %v925 = vsub.s32 %v123, %v924
    %v926 = vrot.slane %v900, %v925
    %v927 = vlaneseq
    %v928 = vshrl.u32 %v927, 7
    %v929 = vsub.s32 %v123, %v928
    %v930 = vrot.slane %v902, %v929
    %v931 = vlaneseq
    %v932 = vshrl.u32 %v931, 7
    %v933 = vsub.s32 %v123, %v932
    %v934 = vrot.slane %v904, %v933
    %v935 = vlaneseq
    %v936 = vshrl.u32 %v935, 7
    %v937 = vsub.s32 %v123, %v936
    %v938 = vrot.slane %v906, %v937
    %v939 = vlaneseq
    %v940 = vshrl.u32 %v939, 7
    %v941 = vsub.s32 %v123, %v940
    %v942 = vrot.slane %v908, %v941
    %v943 = vlaneseq
    %v944 = vshrl.u32 %v943, 7
    %v945 = vsub.s32 %v123, %v944
    %v946 = vrot.slane %v910, %v945
    %v947 = vlaneseq
    %v948 = vshrl.u32 %v947, 7
    %v949 = vsub.s32 %v123, %v948
    %v950 = vrot.slane %v912, %v949
    %v951 = vlaneseq
    %v952 = vshrl.u32 %v951, 7
    %v953 = vsub.s32 %v123, %v952
    %v954 = vrot.slane %v914, %v953
    %v955 = vsel %vm875, %v930, %v926
    %v956 = vsel %vm877, %v934, %v955
    %v957 = vsel %vm879, %v938, %v956
    %v958 = vsel %vm881, %v942, %v957
    %v959 = vsel %vm883, %v946, %v958
    %v960 = vsel %vm885, %v950, %v959
    %v961 = vsel %vm887, %v954, %v960
    %vm963 = vcmask 64512
    %v964 = vsel %vm963, %v961, 0.0
    %965 = vadd.xlane.f32.xlu0 %v964
    %v966 = vpop.xlane.xlu0 %965
    %967 = vst.msk [vmem:[#allocation8] sm:$0xff] %vm963, %v890
    %vm968 = vcmask 7168
    %969 = vst.msk [vmem:[%s5] sm:$0xff] %vm968, %v966
    // Predicated region
    $region30: #{tpu_custom_call.1} parent=1 // pred_check
      _
    $region31: #{tpu_custom_call.1} parent=1 // pred_check_branch
      %971 = sbr.rel (0) target = $region33
    $region32: #{tpu_custom_call.1} parent=1 // pred_region
      %s973 = ssub.s32 128, 128
      %974 = vsyncadd [#allocation4], %s973
      %s976 = sshll.u32 [#allocation8], 4
      %s977 = int_to_ptr.vmem [resolvable:$true] %s976
      %979 = dma.vmem_to_hbm [thread:$0]  %s977, 128, %s4, [#allocation4]
    $region33: #{tpu_custom_call.1} parent=1 // pred_fallthru
      _
    // Predicated region
    $region34: #{tpu_custom_call.1} parent=1 // pred_check
      _
    $region35: #{tpu_custom_call.1} parent=1 // pred_check_branch
      %981 = sbr.rel (0) target = $region37
    $region36: #{tpu_custom_call.1} parent=1 // pred_region
      _
    $region37: #{tpu_custom_call.1} parent=1 // pred_fallthru
      _
    // Predicated region
    $region38: #{tpu_custom_call.1} parent=1 // pred_check
      _
    $region39: #{tpu_custom_call.1} parent=1 // pred_check_branch
      %983 = sbr.rel (0) target = $region41
    $region40: #{tpu_custom_call.1} parent=1 // pred_region
      %984 = dma.done [#allocation4], 128
    $region41: #{tpu_custom_call.1} parent=1 // pred_fallthru
      _
    // Predicated region
    $region42: #{tpu_custom_call.1} parent=1 // pred_check
      _
    $region43: #{tpu_custom_call.1} parent=1 // pred_check_branch
      %986 = sbr.rel (0) target = $region45
    $region44: #{tpu_custom_call.1} parent=1 // pred_region
      _
    $region45: #{tpu_custom_call.1} parent=1 // pred_fallthru
      _
    %987 = vsyncpa [#allocation3], 1
    %988 = vsyncpa [#allocation6], 1
    %989 = vsyncpa [#allocation4], 1

</llo_original>
